<compile_context>
chip_gen: v7x
topology: tpu7x:2x2x1
jax: 0.10.0
libtpu: 0.0.40
codegen_flags: <defaults>
</compile_context>

<pallas_src>
import jax
import jax.numpy as jnp
from jax import lax
from jax.experimental import pallas as pl
from jax.experimental.pallas import tpu as pltpu

NUM_FTRS = 512      # resnet18 fc.in_features
INPUT_SIZE = 32     # "input_size" ctor arg (text feature width)
OUTPUT_SIZE = 16    # "output_size" ctor arg
COMBINED = NUM_FTRS + INPUT_SIZE   # 544
BATCH = 8


def zsl_kernel(x_ref, wt_ref, b_ref, out_ref):
    # Fused forward: backbone affine map + concat + fc were folded (at param-prep time) into a
    # single matmul + bias.  wt_ref is lane-dense [OUTPUT_SIZE, COMBINED], so contract K-on-K
    # ("x @ W.T"), accumulating in f32 on the MXU.
    out = lax.dot_general(
        x_ref[...], wt_ref[...],
        dimension_numbers=(((1,), (1,)), ((), ())),
        preferred_element_type=jnp.float32,
    ) + b_ref[...]
    out_ref[...] = out.astype(out_ref.dtype)


def prepare_params(w_bb, b_bb, w_fc, b_fc):
    """One-time (parameter-load-time) weight prep. NOT on the per-call hot path.

    TODO(synk): the real resnet18 conv stack cannot consume a flat 512-d vector (the reference
    forward is ill-typed); a deterministic 512->512 affine stand-in models
    pretrained_model(x_img) -> img_features (fc replaced by Identity => 512-d output).
    Because that stand-in is affine, it folds exactly into the final Linear:
        out = (x_img @ w_bb + b_bb) @ W_img + x_text @ W_txt + b_fc
            = x @ [w_bb @ W_img ; W_txt] + (b_fc + b_bb @ W_img)

    The folded weight is returned LANE-DENSE, i.e. transposed to [OUTPUT_SIZE, COMBINED]
    (PyTorch [out, in] convention), so the kernel-side VMEM buffer has its long K=544 axis on
    the 128-lane dimension (one contiguous DMA, no 16->128 lane padding waste).
    """
    w_fc_img = w_fc[:, :NUM_FTRS].T        # [512, OUTPUT_SIZE]
    w_fc_txt = w_fc[:, NUM_FTRS:].T        # [INPUT_SIZE, OUTPUT_SIZE]
    w_folded = jnp.concatenate([w_bb @ w_fc_img, w_fc_txt], axis=0)      # [544, 16]
    w_folded_t = jnp.asarray(w_folded.T, jnp.float32)                    # [16, 544] lane-dense
    b_folded = jnp.asarray((b_fc + b_bb @ w_fc_img).reshape(1, OUTPUT_SIZE), jnp.float32)
    return w_folded_t, b_folded


def zero_shot_forward(x, w_folded_t, b_folded):
    """x: [B, 544] f32; w_folded_t: [16, 544] f32; b_folded: [1, 16] f32. Returns [B, 16] f32."""
    B = x.shape[0]
    flops = 2 * B * COMBINED * OUTPUT_SIZE
    bytes_accessed = 4 * (x.size + w_folded_t.size + b_folded.size + B * OUTPUT_SIZE)
    cost = pl.CostEstimate(flops=flops, transcendentals=0, bytes_accessed=bytes_accessed)
    out_shape = jax.ShapeDtypeStruct((B, OUTPUT_SIZE), jnp.float32)

    TM = 256
    if B >= 2 * TM and B % TM == 0:
        # Serving-scale batches: tile M and mark it "parallel" so both v7x TensorCores get work
        # (no-op perf-wise on v5e/v6e, which have a single TC).  Weight/bias blocks are the full
        # arrays, so their block shapes satisfy the (8,128) rule by equaling the array dims.
        return pl.pallas_call(
            zsl_kernel,
            out_shape=out_shape,
            grid=(B // TM,),
            in_specs=[
                pl.BlockSpec((TM, COMBINED), lambda i: (i, 0)),
                pl.BlockSpec((OUTPUT_SIZE, COMBINED), lambda i: (0, 0)),
                pl.BlockSpec((1, OUTPUT_SIZE), lambda i: (0, 0)),
            ],
            out_specs=pl.BlockSpec((TM, OUTPUT_SIZE), lambda i: (i, 0)),
            compiler_params=pltpu.CompilerParams(dimension_semantics=("parallel",)),
            cost_estimate=cost,
        )(x, w_folded_t, b_folded)

    # Small-batch path (the common / tested case): gridless single-tile kernel, everything
    # resident in VMEM (~38 KiB total), no software-pipeline machinery.
    vmem = pl.BlockSpec(memory_space=pltpu.MemorySpace.VMEM)
    return pl.pallas_call(
        zsl_kernel,
        out_shape=out_shape,
        in_specs=[vmem, vmem, vmem],
        out_specs=vmem,
        cost_estimate=cost,
    )(x, w_folded_t, b_folded)


def reference_forward(x, w_bb, b_bb, w_fc, b_fc):
    """Unfolded reference: backbone stand-in -> concat -> Linear (matches module semantics)."""
    x_img = x[:, :NUM_FTRS]
    x_text = x[:, NUM_FTRS:]
    img_features = x_img @ w_bb + b_bb
    combined = jnp.concatenate([img_features, x_text], axis=1)
    return combined @ w_fc.T + b_fc


if __name__ == "__main__":
    key = jax.random.PRNGKey(0)
    k_x, k_bb, k_bbb, k_fc, k_bfc = jax.random.split(key, 5)

    # Deterministic synthetic parameters (shapes dictated by the module's __init__).
    x = jax.random.normal(k_x, (BATCH, COMBINED), dtype=jnp.float32)
    w_bb = jax.random.normal(k_bb, (NUM_FTRS, NUM_FTRS), dtype=jnp.float32) * 0.02
    b_bb = jax.random.normal(k_bbb, (NUM_FTRS,), dtype=jnp.float32) * 0.02
    # nn.Linear(input_size + num_ftrs, output_size): weight [out, in], bias [out]
    w_fc = jax.random.normal(k_fc, (OUTPUT_SIZE, COMBINED), dtype=jnp.float32) * 0.02
    b_fc = jax.random.normal(k_bfc, (OUTPUT_SIZE,), dtype=jnp.float32) * 0.02

    # One-time parameter preparation (off the per-call hot path).
    w_folded_t, b_folded = prepare_params(w_bb, b_bb, w_fc, b_fc)
    w_folded_t = jax.block_until_ready(w_folded_t)
    b_folded = jax.block_until_ready(b_folded)

    out = zero_shot_forward(x, w_folded_t, b_folded)
    out = jax.block_until_ready(out)

    ref = reference_forward(x, w_bb, b_bb, w_fc, b_fc)
    assert out.shape == (BATCH, OUTPUT_SIZE)
    assert jnp.allclose(out, ref, atol=1e-4, rtol=1e-3), \
        f"max abs err {float(jnp.max(jnp.abs(out - ref)))}"

    print("KERNEL_OK")
</pallas_src>

<mosaic_0001>
module attributes {stable_mosaic.version = 11 : i64} {
  func.func @zsl_kernel(%arg0: memref<8x544xf32, #tpu.memory_space<vmem>>, %arg1: memref<16x544xf32, #tpu.memory_space<vmem>>, %arg2: memref<1x16xf32, #tpu.memory_space<vmem>>, %arg3: memref<8x16xf32, #tpu.memory_space<vmem>>) attributes {dimension_semantics = [], scalar_prefetch = 0 : i64, scratch_operands = 0 : i64, tpu.core_type = #tpu.core_type<tc>} {
    %c0 = arith.constant 0 : index
    %c0_0 = arith.constant 0 : index
    %0 = vector.load %arg0[%c0, %c0_0] : memref<8x544xf32, #tpu.memory_space<vmem>>, vector<8x544xf32>
    %c0_1 = arith.constant 0 : index
    %c0_2 = arith.constant 0 : index
    %1 = vector.load %arg1[%c0_1, %c0_2] : memref<16x544xf32, #tpu.memory_space<vmem>>, vector<16x544xf32>
    %cst = arith.constant dense<0.000000e+00> : vector<8x16xf32>
    %2 = tpu.matmul %0, %1, %cst {dimension_numbers = #tpu.dot_dimension_numbers<[1], [1], [0], [0], [0, 0, 1, 0], [], []>} : vector<8x544xf32>, vector<16x544xf32>, vector<8x16xf32> -> vector<8x16xf32>
    %c0_3 = arith.constant 0 : index
    %c0_4 = arith.constant 0 : index
    %3 = vector.load %arg2[%c0_3, %c0_4] : memref<1x16xf32, #tpu.memory_space<vmem>>, vector<1x16xf32>
    %4 = vector.broadcast %3 : vector<1x16xf32> to vector<8x16xf32>
    %5 = arith.addf %2, %4 : vector<8x16xf32>
    %c0_5 = arith.constant 0 : index
    %c0_6 = arith.constant 0 : index
    %6 = vector.load %arg3[%c0_5, %c0_6] : memref<8x16xf32, #tpu.memory_space<vmem>>, vector<8x16xf32>
    tpu.vector_store %arg3[%c0_5, %c0_6], %5 {strides = array<i32>} : memref<8x16xf32, #tpu.memory_space<vmem>>, vector<8x16xf32>,
    return
  }
}

</mosaic_0001>

<llo_original>
// kernel: tpu_custom_call.1
$region0: #{tpu_custom_call.1}
  #allocation0 [shape = 'u32[]', space=smem, size = 0x4, offset = 0x4, fixed_abs, tag = 'smem constant byte address 0x4 - core index']
  #allocation1 [shape = 'u32[144,128]{1,0:T(1,128)}', space=vmem, size = 0x12000, scoped, tag = 'internal scratch']
  %s0 = inlined_call_operand.hbm [shape: f32[8,544], index: 0, kind: input, shape index: {}]
  %s1 = inlined_call_operand.hbm [shape: f32[16,544], index: 1, kind: input, shape index: {}]
  %s2 = inlined_call_operand.vmem [shape: f32[1,16], index: 2, kind: input, shape index: {}]
  %s3 = inlined_call_operand.hbm [shape: f32[8,16], index: 3, kind: output, shape index: {}]
  %s4 = sld [smem:[#allocation0]]
  $region30: #{tpu_custom_call.1} parent=0
    _
  %s6 = ssub.s32 1, %s4
  %s7 = scalar_select 0, %s6, %s4
  $region1: #{tpu_custom_call.1} parent=0
    #allocation2 [shape = 'u8[20480]{0}', space=vmem, size = 0x5000, scoped, tag = 'input window, operand 0, single buffered']
    #allocation3 [shape = 's32[1]{0}', space=sflag, size = 0x4, scoped, tag = 'scoped memory for tpu_custom_call.1']
    #allocation4 [shape = 's32[1]{0}', space=sflag, size = 0x4, scoped, tag = 'scoped memory for tpu_custom_call.1']
    #allocation5 [shape = 'u8[40960]{0}', space=vmem, size = 0xa000, scoped, tag = 'input window, operand 1, single buffered']
    #allocation6 [shape = 's32[1]{0}', space=sflag, size = 0x4, scoped, tag = 'scoped memory for tpu_custom_call.1']
    #allocation7 [shape = 'u8[4096]{0}', space=vmem, size = 0x1000, scoped, tag = 'output window, operand 0, single buffered']
    %8 = vsyncpa [#allocation3], 0
    %9 = vsyncpa [#allocation6], 0
    %10 = vsyncpa [#allocation4], 0
    // Predicated region
    $region2: #{tpu_custom_call.1} parent=1 // pred_check
      _
    $region3: #{tpu_custom_call.1} parent=1 // pred_check_branch
      %12 = sbr.rel (0) target = $region5
    $region4: #{tpu_custom_call.1} parent=1 // pred_region
      %s14 = ssub.s32 640, 640
      %15 = vsyncadd [#allocation3], %s14
      %s17 = sshll.u32 [#allocation2], 4
      %s18 = int_to_ptr.vmem [resolvable:$true] %s17
      %20 = dma.hbm_to_vmem [thread:$0]  %s0, 640, %s18, [#allocation3]
    $region5: #{tpu_custom_call.1} parent=1 // pred_fallthru
      _
    // Predicated region
    $region6: #{tpu_custom_call.1} parent=1 // pred_check
      _
    $region7: #{tpu_custom_call.1} parent=1 // pred_check_branch
      %22 = sbr.rel (0) target = $region9
    $region8: #{tpu_custom_call.1} parent=1 // pred_region
      %s24 = ssub.s32 1280, 1280
      %25 = vsyncadd [#allocation6], %s24
      %s26 = sshll.u32 [#allocation5], 4
      %s27 = int_to_ptr.vmem [resolvable:$true] %s26
      %32 = dma.hbm_to_vmem [thread:$0]  %s1, 1280, %s27, [#allocation6], 640, 640, 40
    $region9: #{tpu_custom_call.1} parent=1 // pred_fallthru
      _
    // Predicated region
    $region10: #{tpu_custom_call.1} parent=1 // pred_check
      _
    $region11: #{tpu_custom_call.1} parent=1 // pred_check_branch
      %34 = sbr.rel (0) target = $region13
    $region12: #{tpu_custom_call.1} parent=1 // pred_region
      _
    $region13: #{tpu_custom_call.1} parent=1 // pred_fallthru
      _
    // Predicated region
    $region14: #{tpu_custom_call.1} parent=1 // pred_check
      _
    $region15: #{tpu_custom_call.1} parent=1 // pred_check_branch
      %36 = sbr.rel (0) target = $region17
    $region16: #{tpu_custom_call.1} parent=1 // pred_region
      %37 = dma.done [#allocation3], 640
    $region17: #{tpu_custom_call.1} parent=1 // pred_fallthru
      _
    // Predicated region
    $region18: #{tpu_custom_call.1} parent=1 // pred_check
      _
    $region19: #{tpu_custom_call.1} parent=1 // pred_check_branch
      %39 = sbr.rel (0) target = $region21
    $region20: #{tpu_custom_call.1} parent=1 // pred_region
      %40 = dma.done [#allocation6], 1280
    $region21: #{tpu_custom_call.1} parent=1 // pred_fallthru
      _
    %v41 = vld [vmem:[#allocation2] sm:$0xff]
    %v42 = vld [vmem:[#allocation2 + $0x8] sm:$0xff]
    %v43 = vld [vmem:[#allocation2 + $0x10] sm:$0xff]
    %v44 = vld [vmem:[#allocation2 + $0x18] sm:$0xff]
    %v45 = vld [vmem:[#allocation2 + $0x20] sm:$0xff]
    %v46 = vld [vmem:[#allocation5] sm:$0xff]
    %v47 = vld [vmem:[#allocation5 + $0x8] sm:$0xff]
    %v48 = vld [vmem:[#allocation5 + $0x10] sm:$0xff]
    %v49 = vld [vmem:[#allocation5 + $0x18] sm:$0xff]
    %v50 = vld [vmem:[#allocation5 + $0x20] sm:$0xff]
    %v51 = vld [vmem:[#allocation5 + $0x28] sm:$0xff]
    %v52 = vld [vmem:[#allocation5 + $0x30] sm:$0xff]
    %v53 = vld [vmem:[#allocation5 + $0x38] sm:$0xff]
    %v54 = vld [vmem:[#allocation5 + $0x40] sm:$0xff]
    %v55 = vld [vmem:[#allocation5 + $0x48] sm:$0xff]
    %v56 = vld [vmem:[%s2] sm:$0x1]
    %v58 = vlaneseq
    %v59 = vshrl.u32 %v58, 7
    %v60 = vsub.s32 0, %v59
    %v61 = vrot.slane %v56, %v60
    %vm63 = vcmask 261120
    %v65 = vsel %vm63, %v45, 0
    %v68 = vsel %vm63, %v50, 0
    %v71 = vsel %vm63, %v55, 0
    %73 = vmatprep.subr.mxu0 %v47
    %74 = vmatpush1.xpose.msra.mxu0 %v46
    %75 = vmatprep.subr.mxu0 %v52
    %76 = vmatpush1.xpose.msra.mxu0 %v51
    %77 = vmatprep.subr.mxu0 0.0
    %78 = vmatpush1.xpose.msra.mxu0 0.0
    %79 = vmatprep.subr.mxu0 0.0
    %80 = vmatpush1.xpose.msra.mxu0 0.0
    %81 = vmatprep.subr.mxu0 0.0
    %82 = vmatpush1.xpose.msra.mxu0 0.0
    %83 = vmatprep.subr.mxu0 0.0
    %84 = vmatpush1.xpose.msra.mxu0 0.0
    %85 = vmatprep.subr.mxu0 0.0
    %86 = vmatpush1.xpose.msra.mxu0 0.0
    %87 = vmatprep.subr.mxu0 0.0
    %88 = vmatpush1.xpose.msra.mxu0 0.0
    %89 = vmatprep.subr.mxu0 0.0
    %90 = vmatpush1.xpose.msra.mxu0 0.0
    %91 = vmatprep.subr.mxu0 0.0
    %92 = vmatpush1.xpose.msra.mxu0 0.0
    %93 = vmatprep.subr.mxu0 0.0
    %94 = vmatpush1.xpose.msra.mxu0 0.0
    %95 = vmatprep.subr.mxu0 0.0
    %96 = vmatpush1.xpose.msra.mxu0 0.0
    %97 = vmatprep.subr.mxu0 0.0
    %98 = vmatpush1.xpose.msra.mxu0 0.0
    %99 = vmatprep.subr.mxu0 0.0
    %100 = vmatpush1.xpose.msra.mxu0 0.0
    %101 = vmatprep.subr.mxu0 0.0
    %102 = vmatpush1.xpose.msra.mxu0 0.0
    %103 = vmatprep.subr.mxu0 0.0
    %104 = vmatpush1.xpose.msra.mxu0 0.0
    %105 = vmatprep.subr.mxu0 0.0
    %106 = vmatpush1.xpose.msra.mxu0 0.0
    %107 = vmatprep.subr.mxu0 0.0
    %108 = vmatpush1.xpose.msra.mxu0 0.0
    %109 = vmatprep.subr.mxu0 0.0
    %110 = vmatpush1.xpose.msra.mxu0 0.0
    %111 = vmatprep.subr.mxu0 0.0
    %112 = vmatpush1.xpose.msra.mxu0 0.0
    %113 = vmatprep.subr.mxu0 0.0
    %114 = vmatpush1.xpose.msra.mxu0 0.0
    %115 = vmatprep.subr.mxu0 0.0
    %116 = vmatpush1.xpose.msra.mxu0 0.0
    %117 = vmatprep.subr.mxu0 0.0
    %118 = vmatpush1.xpose.msra.mxu0 0.0
    %119 = vmatprep.subr.mxu0 0.0
    %120 = vmatpush1.xpose.msra.mxu0 0.0
    %121 = vmatprep.subr.mxu0 0.0
    %122 = vmatpush1.xpose.msra.mxu0 0.0
    %123 = vmatprep.subr.mxu0 0.0
    %124 = vmatpush1.xpose.msra.mxu0 0.0
    %125 = vmatprep.subr.mxu0 0.0
    %126 = vmatpush1.xpose.msra.mxu0 0.0
    %127 = vmatprep.subr.mxu0 0.0
    %128 = vmatpush1.xpose.msra.mxu0 0.0
    %129 = vmatprep.subr.mxu0 0.0
    %130 = vmatpush1.xpose.msra.mxu0 0.0
    %131 = vmatprep.subr.mxu0 0.0
    %132 = vmatpush1.xpose.msra.mxu0 0.0
    %133 = vmatprep.subr.mxu0 0.0
    %134 = vmatpush1.xpose.msra.mxu0 0.0
    %135 = vmatprep.subr.mxu0 0.0
    %136 = vmatpush1.xpose.msra.mxu0 0.0
    %137 = vmatprep.mubr.f32.mxu0 %v42
    %138 = vmatmul.mubr.f32.gmra.mrb[0].mxu0 %v41
    %v139 = vpop.f32.mrb[0].mxu0
    %v140 = vadd.f32 %v61, %v139
    %v141 = vpop.f32.mrb[0].mxu0
    %142 = vdwg.mxu0
    %143 = vmatprep.subr.mxu0 %v49
    %144 = vmatpush1.xpose.msra.mxu0 %v48
    %145 = vmatprep.subr.mxu0 %v54
    %146 = vmatpush1.xpose.msra.mxu0 %v53
    %147 = vmatprep.subr.mxu0 0.0
    %148 = vmatpush1.xpose.msra.mxu0 0.0
    %149 = vmatprep.subr.mxu0 0.0
    %150 = vmatpush1.xpose.msra.mxu0 0.0
    %151 = vmatprep.subr.mxu0 0.0
    %152 = vmatpush1.xpose.msra.mxu0 0.0
    %153 = vmatprep.subr.mxu0 0.0
    %154 = vmatpush1.xpose.msra.mxu0 0.0
    %155 = vmatprep.subr.mxu0 0.0
    %156 = vmatpush1.xpose.msra.mxu0 0.0
    %157 = vmatprep.subr.mxu0 0.0
    %158 = vmatpush1.xpose.msra.mxu0 0.0
    %159 = vmatprep.subr.mxu0 0.0
    %160 = vmatpush1.xpose.msra.mxu0 0.0
    %161 = vmatprep.subr.mxu0 0.0
    %162 = vmatpush1.xpose.msra.mxu0 0.0
    %163 = vmatprep.subr.mxu0 0.0
    %164 = vmatpush1.xpose.msra.mxu0 0.0
    %165 = vmatprep.subr.mxu0 0.0
    %166 = vmatpush1.xpose.msra.mxu0 0.0
    %167 = vmatprep.subr.mxu0 0.0
    %168 = vmatpush1.xpose.msra.mxu0 0.0
    %169 = vmatprep.subr.mxu0 0.0
    %170 = vmatpush1.xpose.msra.mxu0 0.0
    %171 = vmatprep.subr.mxu0 0.0
    %172 = vmatpush1.xpose.msra.mxu0 0.0
    %173 = vmatprep.subr.mxu0 0.0
    %174 = vmatpush1.xpose.msra.mxu0 0.0
    %175 = vmatprep.subr.mxu0 0.0
    %176 = vmatpush1.xpose.msra.mxu0 0.0
    %177 = vmatprep.subr.mxu0 0.0
    %178 = vmatpush1.xpose.msra.mxu0 0.0
    %179 = vmatprep.subr.mxu0 0.0
    %180 = vmatpush1.xpose.msra.mxu0 0.0
    %181 = vmatprep.subr.mxu0 0.0
    %182 = vmatpush1.xpose.msra.mxu0 0.0
    %183 = vmatprep.subr.mxu0 0.0
    %184 = vmatpush1.xpose.msra.mxu0 0.0
    %185 = vmatprep.subr.mxu0 0.0
    %186 = vmatpush1.xpose.msra.mxu0 0.0
    %187 = vmatprep.subr.mxu0 0.0
    %188 = vmatpush1.xpose.msra.mxu0 0.0
    %189 = vmatprep.subr.mxu0 0.0
    %190 = vmatpush1.xpose.msra.mxu0 0.0
    %191 = vmatprep.subr.mxu0 0.0
    %192 = vmatpush1.xpose.msra.mxu0 0.0
    %193 = vmatprep.subr.mxu0 0.0
    %194 = vmatpush1.xpose.msra.mxu0 0.0
    %195 = vmatprep.subr.mxu0 0.0
    %196 = vmatpush1.xpose.msra.mxu0 0.0
    %197 = vmatprep.subr.mxu0 0.0
    %198 = vmatpush1.xpose.msra.mxu0 0.0
    %199 = vmatprep.subr.mxu0 0.0
    %200 = vmatpush1.xpose.msra.mxu0 0.0
    %201 = vmatprep.subr.mxu0 0.0
    %202 = vmatpush1.xpose.msra.mxu0 0.0
    %203 = vmatprep.subr.mxu0 0.0
    %204 = vmatpush1.xpose.msra.mxu0 0.0
    %205 = vmatprep.subr.mxu0 0.0
    %206 = vmatpush1.xpose.msra.mxu0 0.0
    %207 = vmatprep.mubr.f32.mxu0 %v44
    %208 = vmatmul.mubr.f32.gmra.mrb[0].mxu0 %v43
    %v209 = vpop.f32.mrb[0].mxu0
    %v210 = vadd.f32 %v140, %v209
    %v211 = vpop.f32.mrb[0].mxu0
    %212 = vdwg.mxu0
    %213 = vmatprep.subr.mxu0 0.0
    %214 = vmatpush1.xpose.msra.mxu0 %v68
    %215 = vmatprep.subr.mxu0 0.0
    %216 = vmatpush1.xpose.msra.mxu0 %v71
    %217 = vmatprep.subr.mxu0 0.0
    %218 = vmatpush1.xpose.msra.mxu0 0.0
    %219 = vmatprep.subr.mxu0 0.0
    %220 = vmatpush1.xpose.msra.mxu0 0.0
    %221 = vmatprep.subr.mxu0 0.0
    %222 = vmatpush1.xpose.msra.mxu0 0.0
    %223 = vmatprep.subr.mxu0 0.0
    %224 = vmatpush1.xpose.msra.mxu0 0.0
    %225 = vmatprep.subr.mxu0 0.0
    %226 = vmatpush1.xpose.msra.mxu0 0.0
    %227 = vmatprep.subr.mxu0 0.0
    %228 = vmatpush1.xpose.msra.mxu0 0.0
    %229 = vmatprep.subr.mxu0 0.0
    %230 = vmatpush1.xpose.msra.mxu0 0.0
    %231 = vmatprep.subr.mxu0 0.0
    %232 = vmatpush1.xpose.msra.mxu0 0.0
    %233 = vmatprep.subr.mxu0 0.0
    %234 = vmatpush1.xpose.msra.mxu0 0.0
    %235 = vmatprep.subr.mxu0 0.0
    %236 = vmatpush1.xpose.msra.mxu0 0.0
    %237 = vmatprep.subr.mxu0 0.0
    %238 = vmatpush1.xpose.msra.mxu0 0.0
    %239 = vmatprep.subr.mxu0 0.0
    %240 = vmatpush1.xpose.msra.mxu0 0.0
    %241 = vmatprep.subr.mxu0 0.0
    %242 = vmatpush1.xpose.msra.mxu0 0.0
    %243 = vmatprep.subr.mxu0 0.0
    %244 = vmatpush1.xpose.msra.mxu0 0.0
    %245 = vmatprep.subr.mxu0 0.0
    %246 = vmatpush1.xpose.msra.mxu0 0.0
    %247 = vmatprep.subr.mxu0 0.0
    %248 = vmatpush1.xpose.msra.mxu0 0.0
    %249 = vmatprep.subr.mxu0 0.0
    %250 = vmatpush1.xpose.msra.mxu0 0.0
    %251 = vmatprep.subr.mxu0 0.0
    %252 = vmatpush1.xpose.msra.mxu0 0.0
    %253 = vmatprep.subr.mxu0 0.0
    %254 = vmatpush1.xpose.msra.mxu0 0.0
    %255 = vmatprep.subr.mxu0 0.0
    %256 = vmatpush1.xpose.msra.mxu0 0.0
    %257 = vmatprep.subr.mxu0 0.0
    %258 = vmatpush1.xpose.msra.mxu0 0.0
    %259 = vmatprep.subr.mxu0 0.0
    %260 = vmatpush1.xpose.msra.mxu0 0.0
    %261 = vmatprep.subr.mxu0 0.0
    %262 = vmatpush1.xpose.msra.mxu0 0.0
    %263 = vmatprep.subr.mxu0 0.0
    %264 = vmatpush1.xpose.msra.mxu0 0.0
    %265 = vmatprep.subr.mxu0 0.0
    %266 = vmatpush1.xpose.msra.mxu0 0.0
    %267 = vmatprep.subr.mxu0 0.0
    %268 = vmatpush1.xpose.msra.mxu0 0.0
    %269 = vmatprep.subr.mxu0 0.0
    %270 = vmatpush1.xpose.msra.mxu0 0.0
    %271 = vmatprep.subr.mxu0 0.0
    %272 = vmatpush1.xpose.msra.mxu0 0.0
    %273 = vmatprep.subr.mxu0 0.0
    %274 = vmatpush1.xpose.msra.mxu0 0.0
    %275 = vmatprep.subr.mxu0 0.0
    %276 = vmatpush1.xpose.msra.mxu0 0.0
    %277 = vmatprep.mubr.f32.mxu0 0.0
    %278 = vmatmul.mubr.f32.gmra.mrb[0].mxu0 %v65
    %v279 = vpop.f32.mrb[0].mxu0
    %v280 = vadd.f32 %v210, %v279
    %v281 = vpop.f32.mrb[0].mxu0
    %282 = vdwg.mxu0
    %vm283 = vcmask 130048
    %284 = vst.msk [vmem:[#allocation7] sm:$0xff] %vm283, %v280
    // Predicated region
    $region22: #{tpu_custom_call.1} parent=1 // pred_check
      _
    $region23: #{tpu_custom_call.1} parent=1 // pred_check_branch
      %286 = sbr.rel (0) target = $region25
    $region24: #{tpu_custom_call.1} parent=1 // pred_region
      %s288 = ssub.s32 128, 128
      %289 = vsyncadd [#allocation4], %s288
      %s291 = sshll.u32 [#allocation7], 4
      %s292 = int_to_ptr.vmem [resolvable:$true] %s291
      %294 = dma.vmem_to_hbm [thread:$0]  %s292, 128, %s3, [#allocation4]
    $region25: #{tpu_custom_call.1} parent=1 // pred_fallthru
      _
    // Predicated region
    $region26: #{tpu_custom_call.1} parent=1 // pred_check
      _
    $region27: #{tpu_custom_call.1} parent=1 // pred_check_branch
      %296 = sbr.rel (0) target = $region29
    $region28: #{tpu_custom_call.1} parent=1 // pred_region
      %297 = dma.done [#allocation4], 128
    $region29: #{tpu_custom_call.1} parent=1 // pred_fallthru
      _
    %298 = vsyncpa [#allocation3], 1
    %299 = vsyncpa [#allocation6], 1
    %300 = vsyncpa [#allocation4], 1

</llo_original>
